<compile_context>
chip_gen: v7x
topology: tpu7x:2x2x1
jax: 0.10.0
libtpu: 0.0.40
codegen_flags: <defaults>
</compile_context>

<pallas_src>
import jax
import jax.numpy as jnp
from jax.experimental import pallas as pl
from jax.experimental.pallas import tpu as pltpu

BATCH_SIZE = 2          # small stand-in for the original 20
N_POINTS = 8            # points per batch element (small test size)
LATENT_DIM = 32
HIDDEN = 100            # real hidden width (LayerNorm is over this)
HIDDEN_PAD = 128        # lane-padded hidden width
D_OUT = 3
D_OUT_PAD = 128         # lane-dense output slab width
LN_EPS = 1e-5           # torch.nn.LayerNorm default
INV_HIDDEN = 1.0 / HIDDEN


def _round_up(x, m):
    return (x + m - 1) // m * m


def _masked_layernorm(h, gamma, beta, mask):
    # h has exact zeros in the padded lanes (weights/bias zero-padded), so the
    # sum over all 128 lanes equals the sum over the real 100 features.
    mu = jnp.sum(h, axis=-1, keepdims=True) * INV_HIDDEN
    d = (h - mu) * mask                       # zero out padded lanes
    var = jnp.sum(d * d, axis=-1, keepdims=True) * INV_HIDDEN
    # beta padded lanes are zero -> output padded lanes stay zero.
    return d * jax.lax.rsqrt(var + LN_EPS) * gamma + beta


def decoder_kernel(pos_ref, lat_ref,
                   w1p_ref, g1_ref, be1_ref,
                   w2_ref, b2_ref, g2_ref, be2_ref,
                   w3_ref, b3_ref,
                   o_ref):
    pos = pos_ref[0]                          # (tn, 3)
    lat_h = lat_ref[0]                        # (1, 128) = latent@W1_lat + b1

    # Lane mask for the real HIDDEN features (constant, folded by compiler).
    mask = (jax.lax.broadcasted_iota(jnp.int32, (1, HIDDEN_PAD), 1)
            < HIDDEN).astype(jnp.float32)

    # Layer 1: pos @ W1_pos + per-batch latent contribution, then LN + ReLU.
    h = jnp.dot(pos, w1p_ref[...], preferred_element_type=jnp.float32) + lat_h
    h = _masked_layernorm(h, g1_ref[...], be1_ref[...], mask)
    h = jnp.maximum(h, 0.0)

    # Layer 2: Linear(128p) + LN + ReLU (padded rows/cols of W2 are zero).
    h = jnp.dot(h, w2_ref[...], preferred_element_type=jnp.float32) + b2_ref[...]
    h = _masked_layernorm(h, g2_ref[...], be2_ref[...], mask)
    h = jnp.maximum(h, 0.0)

    # Layer 3: lane-dense (tn, 128) output slab; cols 3..127 are zero.
    o_ref[0] = (jnp.dot(h, w3_ref[...], preferred_element_type=jnp.float32)
                + b3_ref[...]).astype(o_ref.dtype)


def decoder_forward(latent, pos, params, *, tn=1024):
    """latent: (B, latent_dim)  pos: (B, N, 3) or (B, N*3)  -> (B, N, 3)"""
    b = latent.shape[0]
    pos = pos.reshape(b, -1, 3)
    n = pos.shape[1]

    (w1, b1, g1, be1, w2, b2, g2, be2, w3, b3) = params
    latent_dim = w1.shape[0] - 3
    hp = HIDDEN_PAD - HIDDEN
    op = D_OUT_PAD - D_OUT

    # --- zero-pad parameters to lane-dense shapes ---------------------------
    w1_lat = jnp.pad(w1[:latent_dim], ((0, 0), (0, hp)))      # (L, 128)
    w1_pos = jnp.pad(w1[latent_dim:], ((0, 0), (0, hp)))      # (3, 128)
    b1_p = jnp.pad(b1.reshape(1, -1), ((0, 0), (0, hp)))
    g1_p = jnp.pad(g1.reshape(1, -1), ((0, 0), (0, hp)))
    be1_p = jnp.pad(be1.reshape(1, -1), ((0, 0), (0, hp)))
    w2_p = jnp.pad(w2, ((0, hp), (0, hp)))                    # (128, 128)
    b2_p = jnp.pad(b2.reshape(1, -1), ((0, 0), (0, hp)))
    g2_p = jnp.pad(g2.reshape(1, -1), ((0, 0), (0, hp)))
    be2_p = jnp.pad(be2.reshape(1, -1), ((0, 0), (0, hp)))
    w3_p = jnp.pad(w3, ((0, hp), (0, op)))                    # (128, 128)
    b3_p = jnp.pad(b3.reshape(1, -1), ((0, 0), (0, op)))

    # Per-batch latent contribution of layer 1 (tiny matmul, done once).
    lat_h = (latent.reshape(b, latent_dim) @ w1_lat + b1_p
             ).reshape(b, 1, HIDDEN_PAD)

    # --- pad N so the row tile divides it (ragged last tile handled by pad) -
    tn = max(8, min(tn, _round_up(n, 8)))
    tn = _round_up(tn, 8)
    n_pad = _round_up(n, tn)
    if n_pad != n:
        pos = jnp.pad(pos, ((0, 0), (0, n_pad - n), (0, 0)))

    grid = (b, n_pad // tn)
    full = lambda a: pl.BlockSpec(a.shape, lambda i, j: (0,) * a.ndim)

    m = b * n_pad
    flops = 2 * m * (3 * HIDDEN_PAD + HIDDEN_PAD * HIDDEN_PAD
                     + HIDDEN_PAD * D_OUT_PAD)
    transcendentals = 2 * m                                   # one rsqrt / LN
    weight_bytes = 4 * (w1_pos.size + w2_p.size + w3_p.size
                        + 6 * HIDDEN_PAD + D_OUT_PAD)
    bytes_accessed = 4 * (m * 3 + b * HIDDEN_PAD + m * D_OUT_PAD) + weight_bytes

    out = pl.pallas_call(
        decoder_kernel,
        out_shape=jax.ShapeDtypeStruct((b, n_pad, D_OUT_PAD), jnp.float32),
        grid=grid,
        in_specs=[
            pl.BlockSpec((1, tn, 3), lambda i, j: (i, j, 0)),          # pos
            pl.BlockSpec((1, 1, HIDDEN_PAD), lambda i, j: (i, 0, 0)),  # lat_h
            full(w1_pos), full(g1_p), full(be1_p),
            full(w2_p), full(b2_p), full(g2_p), full(be2_p),
            full(w3_p), full(b3_p),
        ],
        out_specs=pl.BlockSpec((1, tn, D_OUT_PAD), lambda i, j: (i, j, 0)),
        compiler_params=pltpu.CompilerParams(
            dimension_semantics=("parallel", "parallel")),
        cost_estimate=pl.CostEstimate(
            flops=flops,
            transcendentals=transcendentals,
            bytes_accessed=bytes_accessed),
    )(pos, lat_h, w1_pos, g1_p, be1_p, w2_p, b2_p, g2_p, be2_p, w3_p, b3_p)

    # Drop row padding and the zero output columns.
    return out[:, :n, :D_OUT]


def reference_forward(latent, pos, params):
    """Pure-JAX mirror of the PyTorch Decoder.forward (unpadded math)."""
    b = latent.shape[0]
    pos = pos.reshape(b, -1, 3)
    n = pos.shape[1]
    (w1, b1, g1, be1, w2, b2, g2, be2, w3, b3) = params
    latent_dim = w1.shape[0] - 3
    lat = jnp.broadcast_to(latent.reshape(b, 1, latent_dim), (b, n, latent_dim))
    x = jnp.concatenate([lat, pos], axis=2).reshape(-1, latent_dim + 3)

    def ln(h, g, be):
        mu = jnp.mean(h, axis=-1, keepdims=True)
        var = jnp.mean((h - mu) ** 2, axis=-1, keepdims=True)
        return (h - mu) * jax.lax.rsqrt(var + LN_EPS) * g + be

    h = x @ w1 + b1
    h = jnp.maximum(ln(h, g1, be1), 0.0)
    h = h @ w2 + b2
    h = jnp.maximum(ln(h, g2, be2), 0.0)
    h = h @ w3 + b3
    return h.reshape(b, -1, 3)


def init_params(key):
    ks = jax.random.split(key, 6)

    def lin(kw, kb, fan_in, fan_out):
        bound = 1.0 / jnp.sqrt(fan_in)
        w = jax.random.uniform(kw, (fan_in, fan_out), jnp.float32, -bound, bound)
        bvec = jax.random.uniform(kb, (1, fan_out), jnp.float32, -bound, bound)
        return w, bvec

    w1, b1 = lin(ks[0], ks[1], LATENT_DIM + 3, HIDDEN)
    w2, b2 = lin(ks[2], ks[3], HIDDEN, HIDDEN)
    w3, b3 = lin(ks[4], ks[5], HIDDEN, D_OUT)
    # LayerNorm affine params (torch init: weight=1, bias=0)
    g1 = jnp.ones((1, HIDDEN), jnp.float32)
    be1 = jnp.zeros((1, HIDDEN), jnp.float32)
    g2 = jnp.ones((1, HIDDEN), jnp.float32)
    be2 = jnp.zeros((1, HIDDEN), jnp.float32)
    return (w1, b1, g1, be1, w2, b2, g2, be2, w3, b3)


if __name__ == "__main__":
    key = jax.random.PRNGKey(0)
    k_lat, k_pos, k_par = jax.random.split(key, 3)

    latent = jax.random.normal(k_lat, (BATCH_SIZE, LATENT_DIM), jnp.float32)
    pos = jax.random.normal(k_pos, (BATCH_SIZE, N_POINTS, 3), jnp.float32)
    params = init_params(k_par)

    out = decoder_forward(latent, pos, params)
    out = jax.block_until_ready(out)

    ref = reference_forward(latent, pos, params)
    assert out.shape == (BATCH_SIZE, N_POINTS, 3)
    assert jnp.allclose(out, ref, atol=1e-4, rtol=1e-4), \
        float(jnp.max(jnp.abs(out - ref)))

    print("KERNEL_OK")
</pallas_src>

<mosaic_0001>
module attributes {stable_mosaic.version = 11 : i64} {
  func.func @decoder_kernel(%arg0: i32, %arg1: i32, %arg2: memref<1x8x3xf32, #tpu.memory_space<vmem>>, %arg3: memref<1x1x128xf32, #tpu.memory_space<vmem>>, %arg4: memref<3x128xf32, #tpu.memory_space<vmem>>, %arg5: memref<1x128xf32, #tpu.memory_space<vmem>>, %arg6: memref<1x128xf32, #tpu.memory_space<vmem>>, %arg7: memref<128x128xf32, #tpu.memory_space<vmem>>, %arg8: memref<1x128xf32, #tpu.memory_space<vmem>>, %arg9: memref<1x128xf32, #tpu.memory_space<vmem>>, %arg10: memref<1x128xf32, #tpu.memory_space<vmem>>, %arg11: memref<128x128xf32, #tpu.memory_space<vmem>>, %arg12: memref<1x128xf32, #tpu.memory_space<vmem>>, %arg13: memref<1x8x128xf32, #tpu.memory_space<vmem>>) attributes {dimension_semantics = [#tpu.dimension_semantics<parallel>, #tpu.dimension_semantics<parallel>], iteration_bounds = array<i64: 2, 1>, scalar_prefetch = 0 : i64, scratch_operands = 0 : i64, tpu.core_type = #tpu.core_type<tc>, window_params = [{transform_indices = @transform_0, window_bounds = array<i64: 1, 8, 3>}, {transform_indices = @transform_1, window_bounds = array<i64: 1, 1, 128>}, {pipeline_mode = #tpu.pipeline_mode<synchronous>, transform_indices = @transform_2, window_bounds = array<i64: 3, 128>}, {pipeline_mode = #tpu.pipeline_mode<synchronous>, transform_indices = @transform_3, window_bounds = array<i64: 1, 128>}, {pipeline_mode = #tpu.pipeline_mode<synchronous>, transform_indices = @transform_4, window_bounds = array<i64: 1, 128>}, {pipeline_mode = #tpu.pipeline_mode<synchronous>, transform_indices = @transform_5, window_bounds = array<i64: 128, 128>}, {pipeline_mode = #tpu.pipeline_mode<synchronous>, transform_indices = @transform_6, window_bounds = array<i64: 1, 128>}, {pipeline_mode = #tpu.pipeline_mode<synchronous>, transform_indices = @transform_7, window_bounds = array<i64: 1, 128>}, {pipeline_mode = #tpu.pipeline_mode<synchronous>, transform_indices = @transform_8, window_bounds = array<i64: 1, 128>}, {pipeline_mode = #tpu.pipeline_mode<synchronous>, transform_indices = @transform_9, window_bounds = array<i64: 128, 128>}, {pipeline_mode = #tpu.pipeline_mode<synchronous>, transform_indices = @transform_10, window_bounds = array<i64: 1, 128>}, {transform_indices = @transform_11, window_bounds = array<i64: 1, 8, 128>}]} {
    %c0 = arith.constant 0 : index
    %c0_0 = arith.constant 0 : index
    %c0_1 = arith.constant 0 : index
    %0 = vector.load %arg2[%c0, %c0_0, %c0_1] : memref<1x8x3xf32, #tpu.memory_space<vmem>>, vector<1x8x3xf32>
    %1 = vector.shape_cast %0 : vector<1x8x3xf32> to vector<8x3xf32>
    %c0_2 = arith.constant 0 : index
    %c0_3 = arith.constant 0 : index
    %c0_4 = arith.constant 0 : index
    %2 = vector.load %arg3[%c0_2, %c0_3, %c0_4] : memref<1x1x128xf32, #tpu.memory_space<vmem>>, vector<1x1x128xf32>
    %3 = vector.shape_cast %2 : vector<1x1x128xf32> to vector<1x128xf32>
    %4 = tpu.iota {dimensions = array<i32: 1>} : vector<1x128xi32>
    %c100_i32 = arith.constant 100 : i32
    %5 = vector.broadcast %c100_i32 : i32 to vector<1x128xi32>
    %6 = arith.cmpi slt, %4, %5 : vector<1x128xi32>
    %7 = arith.extui %6 : vector<1x128xi1> to vector<1x128xi32>
    %8 = arith.sitofp %7 : vector<1x128xi32> to vector<1x128xf32>
    %c0_5 = arith.constant 0 : index
    %c0_6 = arith.constant 0 : index
    %9 = vector.load %arg4[%c0_5, %c0_6] : memref<3x128xf32, #tpu.memory_space<vmem>>, vector<3x128xf32>
    %cst = arith.constant dense<0.000000e+00> : vector<8x128xf32>
    %10 = tpu.matmul %1, %9, %cst {dimension_numbers = #tpu.dot_dimension_numbers<[1], [0], [0], [1], [0, 0, 1, 1], [], []>} : vector<8x3xf32>, vector<3x128xf32>, vector<8x128xf32> -> vector<8x128xf32>
    %11 = vector.broadcast %3 : vector<1x128xf32> to vector<8x128xf32>
    %12 = arith.addf %10, %11 : vector<8x128xf32>
    %c0_7 = arith.constant 0 : index
    %c0_8 = arith.constant 0 : index
    %13 = vector.load %arg5[%c0_7, %c0_8] : memref<1x128xf32, #tpu.memory_space<vmem>>, vector<1x128xf32>
    %c0_9 = arith.constant 0 : index
    %c0_10 = arith.constant 0 : index
    %14 = vector.load %arg6[%c0_9, %c0_10] : memref<1x128xf32, #tpu.memory_space<vmem>>, vector<1x128xf32>
    %cst_11 = arith.constant dense<0.000000e+00> : vector<8xf32>
    %15 = vector.multi_reduction <add>, %12, %cst_11 [1] : vector<8x128xf32> to vector<8xf32>
    %16 = vector.shape_cast %15 : vector<8xf32> to vector<8x1xf32>
    %cst_12 = arith.constant 0.00999999977 : f32
    %17 = vector.broadcast %cst_12 : f32 to vector<8x1xf32>
    %18 = arith.mulf %16, %17 : vector<8x1xf32>
    %19 = vector.broadcast %18 : vector<8x1xf32> to vector<8x128xf32>
    %20 = arith.subf %12, %19 : vector<8x128xf32>
    %21 = vector.broadcast %8 : vector<1x128xf32> to vector<8x128xf32>
    %22 = arith.mulf %20, %21 : vector<8x128xf32>
    %23 = arith.mulf %22, %22 : vector<8x128xf32>
    %cst_13 = arith.constant dense<0.000000e+00> : vector<8xf32>
    %24 = vector.multi_reduction <add>, %23, %cst_13 [1] : vector<8x128xf32> to vector<8xf32>
    %25 = vector.shape_cast %24 : vector<8xf32> to vector<8x1xf32>
    %cst_14 = arith.constant 0.00999999977 : f32
    %26 = vector.broadcast %cst_14 : f32 to vector<8x1xf32>
    %27 = arith.mulf %25, %26 : vector<8x1xf32>
    %cst_15 = arith.constant 9.99999974E-6 : f32
    %28 = vector.broadcast %cst_15 : f32 to vector<8x1xf32>
    %29 = arith.addf %27, %28 : vector<8x1xf32>
    %30 = math.rsqrt %29 : vector<8x1xf32>
    %31 = vector.broadcast %30 : vector<8x1xf32> to vector<8x128xf32>
    %32 = arith.mulf %22, %31 : vector<8x128xf32>
    %33 = vector.broadcast %13 : vector<1x128xf32> to vector<8x128xf32>
    %34 = arith.mulf %32, %33 : vector<8x128xf32>
    %35 = vector.broadcast %14 : vector<1x128xf32> to vector<8x128xf32>
    %36 = arith.addf %34, %35 : vector<8x128xf32>
    %cst_16 = arith.constant 0.000000e+00 : f32
    %37 = vector.broadcast %cst_16 : f32 to vector<8x128xf32>
    %38 = arith.maximumf %36, %37 : vector<8x128xf32>
    %c0_17 = arith.constant 0 : index
    %c0_18 = arith.constant 0 : index
    %39 = vector.load %arg7[%c0_17, %c0_18] : memref<128x128xf32, #tpu.memory_space<vmem>>, vector<128x128xf32>
    %cst_19 = arith.constant dense<0.000000e+00> : vector<8x128xf32>
    %40 = tpu.matmul %38, %39, %cst_19 {dimension_numbers = #tpu.dot_dimension_numbers<[1], [0], [0], [1], [0, 0, 1, 1], [], []>} : vector<8x128xf32>, vector<128x128xf32>, vector<8x128xf32> -> vector<8x128xf32>
    %c0_20 = arith.constant 0 : index
    %c0_21 = arith.constant 0 : index
    %41 = vector.load %arg8[%c0_20, %c0_21] : memref<1x128xf32, #tpu.memory_space<vmem>>, vector<1x128xf32>
    %42 = vector.broadcast %41 : vector<1x128xf32> to vector<8x128xf32>
    %43 = arith.addf %40, %42 : vector<8x128xf32>
    %c0_22 = arith.constant 0 : index
    %c0_23 = arith.constant 0 : index
    %44 = vector.load %arg9[%c0_22, %c0_23] : memref<1x128xf32, #tpu.memory_space<vmem>>, vector<1x128xf32>
    %c0_24 = arith.constant 0 : index
    %c0_25 = arith.constant 0 : index
    %45 = vector.load %arg10[%c0_24, %c0_25] : memref<1x128xf32, #tpu.memory_space<vmem>>, vector<1x128xf32>
    %cst_26 = arith.constant dense<0.000000e+00> : vector<8xf32>
    %46 = vector.multi_reduction <add>, %43, %cst_26 [1] : vector<8x128xf32> to vector<8xf32>
    %47 = vector.shape_cast %46 : vector<8xf32> to vector<8x1xf32>
    %cst_27 = arith.constant 0.00999999977 : f32
    %48 = vector.broadcast %cst_27 : f32 to vector<8x1xf32>
    %49 = arith.mulf %47, %48 : vector<8x1xf32>
    %50 = vector.broadcast %49 : vector<8x1xf32> to vector<8x128xf32>
    %51 = arith.subf %43, %50 : vector<8x128xf32>
    %52 = vector.broadcast %8 : vector<1x128xf32> to vector<8x128xf32>
    %53 = arith.mulf %51, %52 : vector<8x128xf32>
    %54 = arith.mulf %53, %53 : vector<8x128xf32>
    %cst_28 = arith.constant dense<0.000000e+00> : vector<8xf32>
    %55 = vector.multi_reduction <add>, %54, %cst_28 [1] : vector<8x128xf32> to vector<8xf32>
    %56 = vector.shape_cast %55 : vector<8xf32> to vector<8x1xf32>
    %cst_29 = arith.constant 0.00999999977 : f32
    %57 = vector.broadcast %cst_29 : f32 to vector<8x1xf32>
    %58 = arith.mulf %56, %57 : vector<8x1xf32>
    %cst_30 = arith.constant 9.99999974E-6 : f32
    %59 = vector.broadcast %cst_30 : f32 to vector<8x1xf32>
    %60 = arith.addf %58, %59 : vector<8x1xf32>
    %61 = math.rsqrt %60 : vector<8x1xf32>
    %62 = vector.broadcast %61 : vector<8x1xf32> to vector<8x128xf32>
    %63 = arith.mulf %53, %62 : vector<8x128xf32>
    %64 = vector.broadcast %44 : vector<1x128xf32> to vector<8x128xf32>
    %65 = arith.mulf %63, %64 : vector<8x128xf32>
    %66 = vector.broadcast %45 : vector<1x128xf32> to vector<8x128xf32>
    %67 = arith.addf %65, %66 : vector<8x128xf32>
    %cst_31 = arith.constant 0.000000e+00 : f32
    %68 = vector.broadcast %cst_31 : f32 to vector<8x128xf32>
    %69 = arith.maximumf %67, %68 : vector<8x128xf32>
    %c0_32 = arith.constant 0 : index
    %c0_33 = arith.constant 0 : index
    %70 = vector.load %arg11[%c0_32, %c0_33] : memref<128x128xf32, #tpu.memory_space<vmem>>, vector<128x128xf32>
    %cst_34 = arith.constant dense<0.000000e+00> : vector<8x128xf32>
    %71 = tpu.matmul %69, %70, %cst_34 {dimension_numbers = #tpu.dot_dimension_numbers<[1], [0], [0], [1], [0, 0, 1, 1], [], []>} : vector<8x128xf32>, vector<128x128xf32>, vector<8x128xf32> -> vector<8x128xf32>
    %c0_35 = arith.constant 0 : index
    %c0_36 = arith.constant 0 : index
    %72 = vector.load %arg12[%c0_35, %c0_36] : memref<1x128xf32, #tpu.memory_space<vmem>>, vector<1x128xf32>
    %73 = vector.broadcast %72 : vector<1x128xf32> to vector<8x128xf32>
    %74 = arith.addf %71, %73 : vector<8x128xf32>
    %c0_37 = arith.constant 0 : index
    %c0_38 = arith.constant 0 : index
    %c0_39 = arith.constant 0 : index
    %75 = vector.load %arg13[%c0_37, %c0_38, %c0_39] : memref<1x8x128xf32, #tpu.memory_space<vmem>>, vector<1x8x128xf32>
    %76 = vector.shape_cast %75 : vector<1x8x128xf32> to vector<8x128xf32>
    %77 = vector.shape_cast %74 : vector<8x128xf32> to vector<1x8x128xf32>
    tpu.vector_store %arg13[%c0_37, %c0_38, %c0_39], %77 {strides = array<i32>} : memref<1x8x128xf32, #tpu.memory_space<vmem>>, vector<1x8x128xf32>,
    return
  }
  func.func @transform_0(%arg0: i32, %arg1: i32) -> (i32, i32, i32) {
    %c0_i32 = arith.constant 0 : i32
    %c0_i32_0 = arith.constant 0 : i32
    return %arg0, %arg1, %c0_i32 : i32, i32, i32
  }
  func.func @transform_1(%arg0: i32, %arg1: i32) -> (i32, i32, i32) {
    %c0_i32 = arith.constant 0 : i32
    %c0_i32_0 = arith.constant 0 : i32
    %c0_i32_1 = arith.constant 0 : i32
    return %arg0, %c0_i32, %c0_i32_0 : i32, i32, i32
  }
  func.func @transform_2(%arg0: i32, %arg1: i32) -> (i32, i32) {
    %c0_i32 = arith.constant 0 : i32
    %c0_i32_0 = arith.constant 0 : i32
    %c0_i32_1 = arith.constant 0 : i32
    return %c0_i32, %c0_i32_0 : i32, i32
  }
  func.func @transform_3(%arg0: i32, %arg1: i32) -> (i32, i32) {
    %c0_i32 = arith.constant 0 : i32
    %c0_i32_0 = arith.constant 0 : i32
    %c0_i32_1 = arith.constant 0 : i32
    return %c0_i32, %c0_i32_0 : i32, i32
  }
  func.func @transform_4(%arg0: i32, %arg1: i32) -> (i32, i32) {
    %c0_i32 = arith.constant 0 : i32
    %c0_i32_0 = arith.constant 0 : i32
    %c0_i32_1 = arith.constant 0 : i32
    return %c0_i32, %c0_i32_0 : i32, i32
  }
  func.func @transform_5(%arg0: i32, %arg1: i32) -> (i32, i32) {
    %c0_i32 = arith.constant 0 : i32
    %c0_i32_0 = arith.constant 0 : i32
    %c0_i32_1 = arith.constant 0 : i32
    return %c0_i32, %c0_i32_0 : i32, i32
  }
  func.func @transform_6(%arg0: i32, %arg1: i32) -> (i32, i32) {
    %c0_i32 = arith.constant 0 : i32
    %c0_i32_0 = arith.constant 0 : i32
    %c0_i32_1 = arith.constant 0 : i32
    return %c0_i32, %c0_i32_0 : i32, i32
  }
  func.func @transform_7(%arg0: i32, %arg1: i32) -> (i32, i32) {
    %c0_i32 = arith.constant 0 : i32
    %c0_i32_0 = arith.constant 0 : i32
    %c0_i32_1 = arith.constant 0 : i32
    return %c0_i32, %c0_i32_0 : i32, i32
  }
  func.func @transform_8(%arg0: i32, %arg1: i32) -> (i32, i32) {
    %c0_i32 = arith.constant 0 : i32
    %c0_i32_0 = arith.constant 0 : i32
    %c0_i32_1 = arith.constant 0 : i32
    return %c0_i32, %c0_i32_0 : i32, i32
  }
  func.func @transform_9(%arg0: i32, %arg1: i32) -> (i32, i32) {
    %c0_i32 = arith.constant 0 : i32
    %c0_i32_0 = arith.constant 0 : i32
    %c0_i32_1 = arith.constant 0 : i32
    return %c0_i32, %c0_i32_0 : i32, i32
  }
  func.func @transform_10(%arg0: i32, %arg1: i32) -> (i32, i32) {
    %c0_i32 = arith.constant 0 : i32
    %c0_i32_0 = arith.constant 0 : i32
    %c0_i32_1 = arith.constant 0 : i32
    return %c0_i32, %c0_i32_0 : i32, i32
  }
  func.func @transform_11(%arg0: i32, %arg1: i32) -> (i32, i32, i32) {
    %c0_i32 = arith.constant 0 : i32
    %c0_i32_0 = arith.constant 0 : i32
    return %arg0, %arg1, %c0_i32 : i32, i32, i32
  }
}

</mosaic_0001>

<llo_original>
// kernel: tpu_custom_call.1
$region0: #{tpu_custom_call.1}
  #allocation0 [shape = 'u32[]', space=smem, size = 0x4, offset = 0x4, fixed_abs, tag = 'smem constant byte address 0x4 - core index']
  #allocation1 [shape = 'u32[144,128]{1,0:T(1,128)}', space=vmem, size = 0x12000, scoped, tag = 'internal scratch']
  %s0 = inlined_call_operand.vmem [shape: f32[2,8,3], index: 0, kind: input, shape index: {}]
  %s1 = inlined_call_operand.vmem [shape: f32[2,1,128], index: 1, kind: input, shape index: {}]
  %s2 = inlined_call_operand.vmem [shape: f32[3,128], index: 2, kind: input, shape index: {}]
  %s3 = inlined_call_operand.vmem [shape: f32[1,128], index: 3, kind: input, shape index: {}]
  %s4 = inlined_call_operand.vmem [shape: f32[1,128], index: 4, kind: input, shape index: {}]
  %s5 = inlined_call_operand.hbm [shape: f32[128,128], index: 5, kind: input, shape index: {}]
  %s6 = inlined_call_operand.vmem [shape: f32[1,128], index: 6, kind: input, shape index: {}]
  %s7 = inlined_call_operand.vmem [shape: f32[1,128], index: 7, kind: input, shape index: {}]
  %s8 = inlined_call_operand.vmem [shape: f32[1,128], index: 8, kind: input, shape index: {}]
  %s9 = inlined_call_operand.hbm [shape: f32[128,128], index: 9, kind: input, shape index: {}]
  %s10 = inlined_call_operand.vmem [shape: f32[1,128], index: 10, kind: input, shape index: {}]
  %s11 = inlined_call_operand.hbm [shape: f32[2,8,128], index: 11, kind: output, shape index: {}]
  %s12 = sld [smem:[#allocation0]]
  $region85: #{tpu_custom_call.1} parent=0
    _
  %s14 = ssub.s32 1, %s12
  %s15 = scalar_select 0, %s14, %s12
  $region1: #{tpu_custom_call.1} parent=0
    #allocation2 [shape = 'u8[65536]{0}', space=vmem, size = 0x10000, scoped, tag = 'input window, operand 5, single buffered']
    #allocation3 [shape = 's32[2]{0}', space=sflag, size = 0x8, scoped, tag = 'scoped memory for tpu_custom_call.1']
    #allocation4 [shape = 's32[2]{0}', space=sflag, size = 0x8, scoped, tag = 'scoped memory for tpu_custom_call.1']
    #allocation5 [shape = 'u8[65536]{0}', space=vmem, size = 0x10000, scoped, tag = 'input window, operand 9, single buffered']
    #allocation6 [shape = 's32[1]{0}', space=sflag, size = 0x4, scoped, tag = 'scoped memory for tpu_custom_call.1']
    #allocation7 [shape = 'u8[8192]{0}', space=vmem, size = 0x2000, scoped, tag = 'output window, operand 0']
    %16 = vsyncpa [#allocation3], 0
    %17 = vsyncpa [#allocation6], 0
    %18 = vsyncpa [#allocation4], 0
    %s19 = scalar_lea.sflag [#allocation4], 1
    %20 = vsyncpa %s19, 0
    loop: start=0, step=1, limit=4
    $region2: #{tpu_custom_call.1} parent=1 // loop_pre_header
      _
    $region3: #{tpu_custom_call.1} parent=1 // loop_header
      %s22 = sphi 0, %s26
      %p23 = scmp.ge.s32.totalorder %s22, 4
      %s29 = sphi 0, %s41
      %s30 = sphi 0, %s37
      %s31 = sphi 0, %s29
      %s32 = sphi 0, %s30
      %s33 = sphi 0, %s31
      %s34 = sphi 0, %s32
      %s46 = sphi 0, %s48
      %s49 = sphi 0, %s46
      %s50 = sphi 0, %s49
      %s66 = sphi 0, %s50
      %s72 = sphi 0, %s74
      %s75 = sphi 0, %s72
      %s76 = sphi 0, %s75
      %s92 = sphi 0, %s76
      %s96 = sphi 0, %s96
      %s98 = sphi 0, %s96
      %s99 = sphi 0, %s98
      %s113 = sphi 0, %s99
      %s117 = sphi 0, %s117
      %s119 = sphi 0, %s117
      %s120 = sphi 0, %s119
      %s134 = sphi 0, %s120
      %s138 = sphi 0, %s138
      %s140 = sphi 0, %s138
      %s141 = sphi 0, %s140
      %s155 = sphi 0, %s141
      %s159 = sphi 0, %s159
      %s161 = sphi 0, %s159
      %s162 = sphi 0, %s161
      %s176 = sphi 0, %s162
      %s180 = sphi 0, %s180
      %s182 = sphi 0, %s180
      %s183 = sphi 0, %s182
      %s197 = sphi 0, %s183
      %s201 = sphi 0, %s201
      %s203 = sphi 0, %s201
      %s204 = sphi 0, %s203
      %s218 = sphi 0, %s204
      %s222 = sphi 0, %s222
      %s224 = sphi 0, %s222
      %s225 = sphi 0, %s224
      %s239 = sphi 0, %s225
      %s243 = sphi 0, %s243
      %s245 = sphi 0, %s243
      %s246 = sphi 0, %s245
      %s260 = sphi 0, %s246
      %s264 = sphi 0, %s264
      %s266 = sphi 0, %s264
      %s267 = sphi 0, %s266
      %s281 = sphi 0, %s267
      %s289 = sphi 0, %s291
      %s292 = sphi 0, %s289
      %s293 = sphi 0, %s292
      %s309 = sphi 0, %s293
    $region4: #{tpu_custom_call.1} parent=1 // loop_header_branch
      %25 = sbr.rel (%p23) target = $region8
    $region5: #{tpu_custom_call.1} parent=1 // loop_body
      %s27 = ssub.s32 %s22, 1
      %s28 = ssub.s32 %s22, 2
      %s35 = sadd.s32 1, %s30
      %p36 = scmp.ge.s32.totalorder %s35, 1
      %s37 = scalar_select %p36, 0, %s35
      %s38 = sadd.s32 1, %s29
      %s39 = scalar_select %p36, %s38, %s29
      %p40 = scmp.ge.s32.totalorder %s39, 2
      %s41 = scalar_select %p40, 0, %s39
      %s42 = ssub.s32 %s29, %s41
      %s43 = ssub.s32 %s30, %s37
      %s44 = sor.u32 %s42, %s43
      %p45 = scmp.eq.s32.totalorder %s44, 0
      %s47 = sadd.s32 %s46, 1
      %s48 = scalar_select %p45, %s46, %s47
      %p51 = pneg %p45
      %p52 = scmp.eq.s32.totalorder %s22, 1
      %p53 = por %p51, %p52
      %p54 = scmp.ne.s32.totalorder %s46, %s49
      %p55 = scmp.eq.s32.totalorder %s22, 0
      %p56 = por %p54, %p55
      %p57 = scmp.ne.s32.totalorder %s46, %s49
      %p58 = scmp.eq.s32.totalorder %s27, 1
      %p59 = por %p57, %p58
      %p60 = scmp.ne.s32.totalorder %s49, %s50
      %p61 = scmp.eq.s32.totalorder %s27, 0
      %p62 = por %p60, %p61
      %p63 = scmp.ne.s32.totalorder %s49, %s50
      %p64 = scmp.eq.s32.totalorder %s28, 1
      %p65 = por %p63, %p64
      %p67 = scmp.ne.s32.totalorder %s50, %s66
      %p68 = scmp.eq.s32.totalorder %s28, 0
      %p69 = por %p67, %p68
      %s70 = ssub.s32 %s29, %s41
      %p71 = scmp.eq.s32.totalorder %s70, 0
      %s73 = sadd.s32 %s72, 1
      %s74 = scalar_select %p71, %s72, %s73
      %p77 = pneg %p71
      %p78 = scmp.eq.s32.totalorder %s22, 1
      %p79 = por %p77, %p78
      %p80 = scmp.ne.s32.totalorder %s72, %s75
      %p81 = scmp.eq.s32.totalorder %s22, 0
      %p82 = por %p80, %p81
      %p83 = scmp.ne.s32.totalorder %s72, %s75
      %p84 = scmp.eq.s32.totalorder %s27, 1
      %p85 = por %p83, %p84
      %p86 = scmp.ne.s32.totalorder %s75, %s76
      %p87 = scmp.eq.s32.totalorder %s27, 0
      %p88 = por %p86, %p87
      %p89 = scmp.ne.s32.totalorder %s75, %s76
      %p90 = scmp.eq.s32.totalorder %s28, 1
      %p91 = por %p89, %p90
      %p93 = scmp.ne.s32.totalorder %s76, %s92
      %p94 = scmp.eq.s32.totalorder %s28, 0
      %p95 = por %p93, %p94
      %s97 = sadd.s32 %s96, 1
      %p100 = scmp.eq.s32.totalorder %s22, 1
      %p101 = scmp.ne.s32.totalorder %s96, %s98
      %p102 = scmp.eq.s32.totalorder %s22, 0
      %p103 = por %p101, %p102
      %p104 = scmp.ne.s32.totalorder %s96, %s98
      %p105 = scmp.eq.s32.totalorder %s27, 1
      %p106 = por %p104, %p105
      %p107 = scmp.ne.s32.totalorder %s98, %s99
      %p108 = scmp.eq.s32.totalorder %s27, 0
      %p109 = por %p107, %p108
      %p110 = scmp.ne.s32.totalorder %s98, %s99
      %p111 = scmp.eq.s32.totalorder %s28, 1
      %p112 = por %p110, %p111
      %p114 = scmp.ne.s32.totalorder %s99, %s113
      %p115 = scmp.eq.s32.totalorder %s28, 0
      %p116 = por %p114, %p115
      %s118 = sadd.s32 %s117, 1
      %p121 = scmp.eq.s32.totalorder %s22, 1
      %p122 = scmp.ne.s32.totalorder %s117, %s119
      %p123 = scmp.eq.s32.totalorder %s22, 0
      %p124 = por %p122, %p123
      %p125 = scmp.ne.s32.totalorder %s117, %s119
      %p126 = scmp.eq.s32.totalorder %s27, 1
      %p127 = por %p125, %p126
      %p128 = scmp.ne.s32.totalorder %s119, %s120
      %p129 = scmp.eq.s32.totalorder %s27, 0
      %p130 = por %p128, %p129
      %p131 = scmp.ne.s32.totalorder %s119, %s120
      %p132 = scmp.eq.s32.totalorder %s28, 1
      %p133 = por %p131, %p132
      %p135 = scmp.ne.s32.totalorder %s120, %s134
      %p136 = scmp.eq.s32.totalorder %s28, 0
      %p137 = por %p135, %p136
      %s139 = sadd.s32 %s138, 1
      %p142 = scmp.eq.s32.totalorder %s22, 1
      %p143 = scmp.ne.s32.totalorder %s138, %s140
      %p144 = scmp.eq.s32.totalorder %s22, 0
      %p145 = por %p143, %p144
      %p146 = scmp.ne.s32.totalorder %s138, %s140
      %p147 = scmp.eq.s32.totalorder %s27, 1
      %p148 = por %p146, %p147
      %p149 = scmp.ne.s32.totalorder %s140, %s141
      %p150 = scmp.eq.s32.totalorder %s27, 0
      %p151 = por %p149, %p150
      %p152 = scmp.ne.s32.totalorder %s140, %s141
      %p153 = scmp.eq.s32.totalorder %s28, 1
      %p154 = por %p152, %p153
      %p156 = scmp.ne.s32.totalorder %s141, %s155
      %p157 = scmp.eq.s32.totalorder %s28, 0
      %p158 = por %p156, %p157
      %s160 = sadd.s32 %s159, 1
      %p163 = scmp.eq.s32.totalorder %s22, 1
      %p164 = scmp.ne.s32.totalorder %s159, %s161
      %p165 = scmp.eq.s32.totalorder %s22, 0
      %p166 = por %p164, %p165
      %p167 = scmp.ne.s32.totalorder %s159, %s161
      %p168 = scmp.eq.s32.totalorder %s27, 1
      %p169 = por %p167, %p168
      %p170 = scmp.ne.s32.totalorder %s161, %s162
      %p171 = scmp.eq.s32.totalorder %s27, 0
      %p172 = por %p170, %p171
      %p173 = scmp.ne.s32.totalorder %s161, %s162
      %p174 = scmp.eq.s32.totalorder %s28, 1
      %p175 = por %p173, %p174
      %p177 = scmp.ne.s32.totalorder %s162, %s176
      %p178 = scmp.eq.s32.totalorder %s28, 0
      %p179 = por %p177, %p178
      %s181 = sadd.s32 %s180, 1
      %p184 = scmp.eq.s32.totalorder %s22, 1
      %p185 = scmp.ne.s32.totalorder %s180, %s182
      %p186 = scmp.eq.s32.totalorder %s22, 0
      %p187 = por %p185, %p186
      %p188 = scmp.ne.s32.totalorder %s180, %s182
      %p189 = scmp.eq.s32.totalorder %s27, 1
      %p190 = por %p188, %p189
      %p191 = scmp.ne.s32.totalorder %s182, %s183
      %p192 = scmp.eq.s32.totalorder %s27, 0
      %p193 = por %p191, %p192
      %p194 = scmp.ne.s32.totalorder %s182, %s183
      %p195 = scmp.eq.s32.totalorder %s28, 1
      %p196 = por %p194, %p195
      %p198 = scmp.ne.s32.totalorder %s183, %s197
      %p199 = scmp.eq.s32.totalorder %s28, 0
      %p200 = por %p198, %p199
      %s202 = sadd.s32 %s201, 1
      %p205 = scmp.eq.s32.totalorder %s22, 1
      %p206 = scmp.ne.s32.totalorder %s201, %s203
      %p207 = scmp.eq.s32.totalorder %s22, 0
      %p208 = por %p206, %p207
      %p209 = scmp.ne.s32.totalorder %s201, %s203
      %p210 = scmp.eq.s32.totalorder %s27, 1
      %p211 = por %p209, %p210
      %p212 = scmp.ne.s32.totalorder %s203, %s204
      %p213 = scmp.eq.s32.totalorder %s27, 0
      %p214 = por %p212, %p213
      %p215 = scmp.ne.s32.totalorder %s203, %s204
      %p216 = scmp.eq.s32.totalorder %s28, 1
      %p217 = por %p215, %p216
      %p219 = scmp.ne.s32.totalorder %s204, %s218
      %p220 = scmp.eq.s32.totalorder %s28, 0
      %p221 = por %p219, %p220
      %s223 = sadd.s32 %s222, 1
      %p226 = scmp.eq.s32.totalorder %s22, 1
      %p227 = scmp.ne.s32.totalorder %s222, %s224
      %p228 = scmp.eq.s32.totalorder %s22, 0
      %p229 = por %p227, %p228
      %p230 = scmp.ne.s32.totalorder %s222, %s224
      %p231 = scmp.eq.s32.totalorder %s27, 1
      %p232 = por %p230, %p231
      %p233 = scmp.ne.s32.totalorder %s224, %s225
      %p234 = scmp.eq.s32.totalorder %s27, 0
      %p235 = por %p233, %p234
      %p236 = scmp.ne.s32.totalorder %s224, %s225
      %p237 = scmp.eq.s32.totalorder %s28, 1
      %p238 = por %p236, %p237
      %p240 = scmp.ne.s32.totalorder %s225, %s239
      %p241 = scmp.eq.s32.totalorder %s28, 0
      %p242 = por %p240, %p241
      %s244 = sadd.s32 %s243, 1
      %p247 = scmp.eq.s32.totalorder %s22, 1
      %p248 = scmp.ne.s32.totalorder %s243, %s245
      %p249 = scmp.eq.s32.totalorder %s22, 0
      %p250 = por %p248, %p249
      %p251 = scmp.ne.s32.totalorder %s243, %s245
      %p252 = scmp.eq.s32.totalorder %s27, 1
      %p253 = por %p251, %p252
      %p254 = scmp.ne.s32.totalorder %s245, %s246
      %p255 = scmp.eq.s32.totalorder %s27, 0
      %p256 = por %p254, %p255
      %p257 = scmp.ne.s32.totalorder %s245, %s246
      %p258 = scmp.eq.s32.totalorder %s28, 1
      %p259 = por %p257, %p258
      %p261 = scmp.ne.s32.totalorder %s246, %s260
      %p262 = scmp.eq.s32.totalorder %s28, 0
      %p263 = por %p261, %p262
      %s265 = sadd.s32 %s264, 1
      %p268 = scmp.eq.s32.totalorder %s22, 1
      %p269 = scmp.ne.s32.totalorder %s264, %s266
      %p270 = scmp.eq.s32.totalorder %s22, 0
      %p271 = por %p269, %p270
      %p272 = scmp.ne.s32.totalorder %s264, %s266
      %p273 = scmp.eq.s32.totalorder %s27, 1
      %p274 = por %p272, %p273
      %p275 = scmp.ne.s32.totalorder %s266, %s267
      %p276 = scmp.eq.s32.totalorder %s27, 0
      %p277 = por %p275, %p276
      %p278 = scmp.ne.s32.totalorder %s266, %s267
      %p279 = scmp.eq.s32.totalorder %s28, 1
      %p280 = por %p278, %p279
      %p282 = scmp.ne.s32.totalorder %s267, %s281
      %p283 = scmp.eq.s32.totalorder %s28, 0
      %p284 = por %p282, %p283
      %s285 = ssub.s32 %s29, %s41
      %s286 = ssub.s32 %s30, %s37
      %s287 = sor.u32 %s285, %s286
      %p288 = scmp.eq.s32.totalorder %s287, 0
      %s290 = sadd.s32 %s289, 1
      %s291 = scalar_select %p288, %s289, %s290
      %p294 = pneg %p288
      %p295 = scmp.eq.s32.totalorder %s22, 1
      %p296 = por %p294, %p295
      %p297 = scmp.ne.s32.totalorder %s289, %s292
      %p298 = scmp.eq.s32.totalorder %s22, 0
      %p299 = por %p297, %p298
      %p300 = scmp.ne.s32.totalorder %s289, %s292
      %p301 = scmp.eq.s32.totalorder %s27, 1
      %p302 = por %p300, %p301
      %p303 = scmp.ne.s32.totalorder %s292, %s293
      %p304 = scmp.eq.s32.totalorder %s27, 0
      %p305 = por %p303, %p304
      %p306 = scmp.ne.s32.totalorder %s292, %s293
      %p307 = scmp.eq.s32.totalorder %s28, 1
      %p308 = por %p306, %p307
      %p310 = scmp.ne.s32.totalorder %s293, %s309
      %p311 = scmp.eq.s32.totalorder %s28, 0
      %p312 = por %p310, %p311
      %p313 = scmp.le.s32.totalorder 1, %s22
      %p314 = scmp.lt.s32.totalorder %s22, 3
      %p315 = pnand %p313, %p314
      %p316 = pneg %p315
      // Predicated region
      $region9: #{tpu_custom_call.1} parent=5 // pred_check
        _
      $region10: #{tpu_custom_call.1} parent=5 // pred_check_branch
        %318 = sbr.rel (%p315) target = $region12
      $region11: #{tpu_custom_call.1} parent=5 // pred_region
        %s319 = ssub.s32 %s22, 1
        // Predicated region
        $region13: #{tpu_custom_call.1} parent=11 // pred_check
          %p320 = pneg %p109
        $region14: #{tpu_custom_call.1} parent=11 // pred_check_branch
          %322 = sbr.rel (%p320) target = $region16
        $region15: #{tpu_custom_call.1} parent=11 // pred_region
          _
        $region16: #{tpu_custom_call.1} parent=11 // pred_fallthru
          _
        // Predicated region
        $region17: #{tpu_custom_call.1} parent=11 // pred_check
          %p323 = pneg %p130
        $region18: #{tpu_custom_call.1} parent=11 // pred_check_branch
          %325 = sbr.rel (%p323) target = $region20
        $region19: #{tpu_custom_call.1} parent=11 // pred_region
          _
        $region20: #{tpu_custom_call.1} parent=11 // pred_fallthru
          _
        // Predicated region
        $region21: #{tpu_custom_call.1} parent=11 // pred_check
          %p326 = pneg %p151
        $region22: #{tpu_custom_call.1} parent=11 // pred_check_branch
          %328 = sbr.rel (%p326) target = $region24
        $region23: #{tpu_custom_call.1} parent=11 // pred_region
          _
        $region24: #{tpu_custom_call.1} parent=11 // pred_fallthru
          _
        // Predicated region
        $region25: #{tpu_custom_call.1} parent=11 // pred_check
          %p329 = pneg %p172
        $region26: #{tpu_custom_call.1} parent=11 // pred_check_branch
          %331 = sbr.rel (%p329) target = $region28
        $region27: #{tpu_custom_call.1} parent=11 // pred_region
          %s333 = ssub.s32 2048, 2048
          %334 = vsyncadd [#allocation3], %s333
          %s335 = sshll.u32 [#allocation2], 4
          %s336 = int_to_ptr.vmem [resolvable:$true] %s335
          %341 = dma.hbm_to_vmem [thread:$0]  %s5, 2048, %s336, [#allocation3], 128, 128, 8
        $region28: #{tpu_custom_call.1} parent=11 // pred_fallthru
          _
        // Predicated region
        $region29: #{tpu_custom_call.1} parent=11 // pred_check
          %p342 = pneg %p193
        $region30: #{tpu_custom_call.1} parent=11 // pred_check_branch
          %344 = sbr.rel (%p342) target = $region32
        $region31: #{tpu_custom_call.1} parent=11 // pred_region
          _
        $region32: #{tpu_custom_call.1} parent=11 // pred_fallthru
          _
        // Predicated region
        $region33: #{tpu_custom_call.1} parent=11 // pred_check
          %p345 = pneg %p214
        $region34: #{tpu_custom_call.1} parent=11 // pred_check_branch
          %347 = sbr.rel (%p345) target = $region36
        $region35: #{tpu_custom_call.1} parent=11 // pred_region
          _
        $region36: #{tpu_custom_call.1} parent=11 // pred_fallthru
          _
        // Predicated region
        $region37: #{tpu_custom_call.1} parent=11 // pred_check
          %p348 = pneg %p235
        $region38: #{tpu_custom_call.1} parent=11 // pred_check_branch
          %350 = sbr.rel (%p348) target = $region40
        $region39: #{tpu_custom_call.1} parent=11 // pred_region
          _
        $region40: #{tpu_custom_call.1} parent=11 // pred_fallthru
          _
        // Predicated region
        $region41: #{tpu_custom_call.1} parent=11 // pred_check
          %p351 = pneg %p256
        $region42: #{tpu_custom_call.1} parent=11 // pred_check_branch
          %353 = sbr.rel (%p351) target = $region44
        $region43: #{tpu_custom_call.1} parent=11 // pred_region
          %s355 = ssub.s32 2048, 2048
          %356 = vsyncadd [#allocation6], %s355
          %s357 = sshll.u32 [#allocation5], 4
          %s358 = int_to_ptr.vmem [resolvable:$true] %s357
          %363 = dma.hbm_to_vmem [thread:$0]  %s9, 2048, %s358, [#allocation6], 128, 128, 8
        $region44: #{tpu_custom_call.1} parent=11 // pred_fallthru
          _
        // Predicated region
        $region45: #{tpu_custom_call.1} parent=11 // pred_check
          %p364 = pneg %p277
        $region46: #{tpu_custom_call.1} parent=11 // pred_check_branch
          %366 = sbr.rel (%p364) target = $region48
        $region47: #{tpu_custom_call.1} parent=11 // pred_region
          _
        $region48: #{tpu_custom_call.1} parent=11 // pred_fallthru
          _
      $region12: #{tpu_custom_call.1} parent=5 // pred_fallthru
        _
      %p367 = scmp.lt.s32.totalorder %s22, 2
      // Predicated region
      $region49: #{tpu_custom_call.1} parent=5 // pred_check
        %p368 = pneg %p367
      $region50: #{tpu_custom_call.1} parent=5 // pred_check_branch
        %370 = sbr.rel (%p368) target = $region52
      $region51: #{tpu_custom_call.1} parent=5 // pred_region
        // Predicated region
        $region53: #{tpu_custom_call.1} parent=51 // pred_check
          %p371 = pneg %p56
        $region54: #{tpu_custom_call.1} parent=51 // pred_check_branch
          %373 = sbr.rel (%p371) target = $region56
        $region55: #{tpu_custom_call.1} parent=51 // pred_region
          %p374 = scmp.lt.s32.totalorder %s29, 1
          %s375 = scalar_select %p374, %s29, 1
          %p376 = scmp.lt.s32.totalorder %s30, 0
          %s377 = scalar_select %p376, %s30, 0
          %s378 = sadd.s32 %s377, %s375
          %s379 = smul.addr %s378, 8
          %s380 = scalar_lea.vmem %s0, %s379
        $region56: #{tpu_custom_call.1} parent=51 // pred_fallthru
          _
        // Predicated region
        $region57: #{tpu_custom_call.1} parent=51 // pred_check
          %p381 = pneg %p82
        $region58: #{tpu_custom_call.1} parent=51 // pred_check_branch
          %383 = sbr.rel (%p381) target = $region60
        $region59: #{tpu_custom_call.1} parent=51 // pred_region
          %p384 = scmp.lt.s32.totalorder %s29, 1
          %s385 = scalar_select %p384, %s29, 1
          %s386 = scalar_lea.vmem %s1, %s385
        $region60: #{tpu_custom_call.1} parent=51 // pred_fallthru
          _
      $region52: #{tpu_custom_call.1} parent=5 // pred_fallthru
        _
      %p387 = scmp.le.s32.totalorder 1, %s22
      %p388 = scmp.lt.s32.totalorder %s22, 3
      %p389 = pnand %p387, %p388
      %p390 = pneg %p389
      // Predicated region
      $region61: #{tpu_custom_call.1} parent=5 // pred_check
        _
      $region62: #{tpu_custom_call.1} parent=5 // pred_check_branch
        %392 = sbr.rel (%p389) target = $region64
      $region63: #{tpu_custom_call.1} parent=5 // pred_region
        %s393 = ssub.s32 %s22, 1
        // Predicated region
        $region65: #{tpu_custom_call.1} parent=63 // pred_check
          %p394 = pneg %p172
        $region66: #{tpu_custom_call.1} parent=63 // pred_check_branch
          %396 = sbr.rel (%p394) target = $region68
        $region67: #{tpu_custom_call.1} parent=63 // pred_region
          %397 = dma.done [#allocation3], 2048
        $region68: #{tpu_custom_call.1} parent=63 // pred_fallthru
          _
        // Predicated region
        $region69: #{tpu_custom_call.1} parent=63 // pred_check
          %p398 = pneg %p256
        $region70: #{tpu_custom_call.1} parent=63 // pred_check_branch
          %400 = sbr.rel (%p398) target = $region72
        $region71: #{tpu_custom_call.1} parent=63 // pred_region
          %401 = dma.done [#allocation6], 2048
        $region72: #{tpu_custom_call.1} parent=63 // pred_fallthru
          _
        %p402 = scmp.lt.s32.totalorder %s31, 1
        %s403 = scalar_select %p402, %s31, 1
        %p404 = scmp.lt.s32.totalorder %s32, 0
        %s405 = scalar_select %p404, %s32, 0
        %s406 = sadd.s32 %s405, %s403
        %s407 = smul.addr %s406, 8
        %s408 = scalar_lea.vmem %s0, %s407
        %p409 = pneg %p62
        %p410 = pneg %p59
        %p411 = scmp.lt.s32.totalorder %s31, 1
        %s412 = scalar_select %p411, %s31, 1
        %s413 = scalar_lea.vmem %s1, %s412
        %p414 = pneg %p88
        %p415 = pneg %p85
        %p416 = pneg %p109
        %p417 = pneg %p106
        %p418 = pneg %p130
        %p419 = pneg %p127
        %p420 = pneg %p151
        %p421 = pneg %p148
        %p422 = pneg %p172
        %p423 = pneg %p169
        %p424 = pneg %p193
        %p425 = pneg %p190
        %p426 = pneg %p214
        %p427 = pneg %p211
        %p428 = pneg %p235
        %p429 = pneg %p232
        %p430 = pneg %p256
        %p431 = pneg %p253
        %p432 = pneg %p277
        %p433 = pneg %p274
        %p434 = pneg %p305
        %p435 = pneg %p302
        %s436 = sand.u32 %s292, 1
        %s437 = scalar_lea.sflag [#allocation4], %s436
        %s438 = sand.u32 %s292, 1
        %s439 = smul.addr %s438, 8
        %s440 = scalar_lea.vmem [#allocation7], %s439
        %p441 = scmp.lt.s32.totalorder %s31, 1
        %s442 = scalar_select %p441, %s31, 1
        %p443 = scmp.lt.s32.totalorder %s32, 0
        %s444 = scalar_select %p443, %s32, 0
        %s445 = sadd.s32 %s444, %s442
        %s446 = smul.addr %s445, 8
        %s447 = scalar_lea.vmem %s0, %s446
        %p448 = scmp.lt.s32.totalorder %s31, 1
        %s449 = scalar_select %p448, %s31, 1
        %s450 = scalar_lea.vmem %s1, %s449
        %v451 = vld [vmem:[%s447] sm:$0xff]
        %v452 = vld [vmem:[%s450] sm:$0x1]
        %v453 = vlaneseq
        %v454 = vand.u32 %v453, 127
        %vm455 = vcmp.lt.s32.totalorder %v454, 100
        %v456 = vsel %vm455, 1, 0
        %v457 = vcvt.s32.f32 %v456
        %v458 = vld [vmem:[%s2] sm:$0x7]
        %v460 = vlaneseq
        %v461 = vshrl.u32 %v460, 7
        %v462 = vsub.s32 0, %v461
        %v463 = vrot.slane %v452, %v462
        %vm465 = vcmask 23552
        %v467 = vsel %vm465, %v451, 0
        %vm469 = vcmask 1042432
        %v471 = vsel %vm469, %v458, 0
        %473 = vmatprep.subr.mxu0 0.0
        %474 = vmatpush1.msra.mxu0 %v471
        %475 = vmatprep.subr.mxu0 0.0
        %476 = vmatpush1.msra.mxu0 0.0
        %477 = vmatprep.subr.mxu0 0.0
        %478 = vmatpush1.msra.mxu0 0.0
        %479 = vmatprep.subr.mxu0 0.0
        %480 = vmatpush1.msra.mxu0 0.0
        %481 = vmatprep.subr.mxu0 0.0
        %482 = vmatpush1.msra.mxu0 0.0
        %483 = vmatprep.subr.mxu0 0.0
        %484 = vmatpush1.msra.mxu0 0.0
        %485 = vmatprep.subr.mxu0 0.0
        %486 = vmatpush1.msra.mxu0 0.0
        %487 = vmatprep.subr.mxu0 0.0
        %488 = vmatpush1.msra.mxu0 0.0
        %489 = vmatprep.subr.mxu0 0.0
        %490 = vmatpush1.msra.mxu0 0.0
        %491 = vmatprep.subr.mxu0 0.0
        %492 = vmatpush1.msra.mxu0 0.0
        %493 = vmatprep.subr.mxu0 0.0
        %494 = vmatpush1.msra.mxu0 0.0
        %495 = vmatprep.subr.mxu0 0.0
        %496 = vmatpush1.msra.mxu0 0.0
        %497 = vmatprep.subr.mxu0 0.0
        %498 = vmatpush1.msra.mxu0 0.0
        %499 = vmatprep.subr.mxu0 0.0
        %500 = vmatpush1.msra.mxu0 0.0
        %501 = vmatprep.subr.mxu0 0.0
        %502 = vmatpush1.msra.mxu0 0.0
        %503 = vmatprep.subr.mxu0 0.0
        %504 = vmatpush1.msra.mxu0 0.0
        %505 = vmatprep.subr.mxu0 0.0
        %506 = vmatpush1.msra.mxu0 0.0
        %507 = vmatprep.subr.mxu0 0.0
        %508 = vmatpush1.msra.mxu0 0.0
        %509 = vmatprep.subr.mxu0 0.0
        %510 = vmatpush1.msra.mxu0 0.0
        %511 = vmatprep.subr.mxu0 0.0
        %512 = vmatpush1.msra.mxu0 0.0
        %513 = vmatprep.subr.mxu0 0.0
        %514 = vmatpush1.msra.mxu0 0.0
        %515 = vmatprep.subr.mxu0 0.0
        %516 = vmatpush1.msra.mxu0 0.0
        %517 = vmatprep.subr.mxu0 0.0
        %518 = vmatpush1.msra.mxu0 0.0
        %519 = vmatprep.subr.mxu0 0.0
        %520 = vmatpush1.msra.mxu0 0.0
        %521 = vmatprep.subr.mxu0 0.0
        %522 = vmatpush1.msra.mxu0 0.0
        %523 = vmatprep.subr.mxu0 0.0
        %524 = vmatpush1.msra.mxu0 0.0
        %525 = vmatprep.subr.mxu0 0.0
        %526 = vmatpush1.msra.mxu0 0.0
        %527 = vmatprep.subr.mxu0 0.0
        %528 = vmatpush1.msra.mxu0 0.0
        %529 = vmatprep.subr.mxu0 0.0
        %530 = vmatpush1.msra.mxu0 0.0
        %531 = vmatprep.subr.mxu0 0.0
        %532 = vmatpush1.msra.mxu0 0.0
        %533 = vmatprep.subr.mxu0 0.0
        %534 = vmatpush1.msra.mxu0 0.0
        %535 = vmatprep.subr.mxu0 0.0
        %536 = vmatpush1.msra.mxu0 0.0
        %537 = vmatprep.mubr.f32.mxu0 0.0
        %538 = vmatmul.mubr.f32.gmra.mrb[0].mxu0 %v467
        %v539 = vpop.f32.mrb[0].mxu0
        %v540 = vadd.f32 %v463, %v539
        %v541 = vpop.f32.mrb[0].mxu0
        %542 = vdwg.mxu0
        %v543 = vld [vmem:[%s3] sm:$0x1]
        %v544 = vld [vmem:[%s4] sm:$0x1]
        %545 = vadd.xlane.f32.xlu0 %v540
        %v546 = vpop.xlane.xlu0 %545
        %v547 = vmul.f32 %v546, 0.01
        %v548 = vsub.f32 %v540, %v547
        %v549 = vmul.f32 %v548, %v457
        %v550 = vmul.f32 %v549, %v549
        %551 = vadd.xlane.f32.xlu0 %v550
        %v552 = vpop.xlane.xlu0 %551
        %v553 = vmul.f32 %v552, 0.01
        %v554 = vadd.f32 %v553, 1e-05
        %v555 = vrsqrt.pop %v554
        %v556 = vmul.f32 %v549, %v555
        %v558 = vlaneseq
        %v559 = vshrl.u32 %v558, 7
        %v560 = vsub.s32 0, %v559
        %v561 = vrot.slane %v543, %v560
        %v563 = vmul.f32 %v556, %v561
        %v565 = vlaneseq
        %v566 = vshrl.u32 %v565, 7
        %v567 = vsub.s32 0, %v566
        %v568 = vrot.slane %v544, %v567
        %v570 = vadd.f32 %v563, %v568
        %v571 = vmax.f32 %v570, 0.0
        %v572 = vld [vmem:[#allocation2] sm:$0xff]
        %v573 = vld [vmem:[#allocation2 + $0x8] sm:$0xff]
        %v574 = vld [vmem:[#allocation2 + $0x10] sm:$0xff]
        %v575 = vld [vmem:[#allocation2 + $0x18] sm:$0xff]
        %v576 = vld [vmem:[#allocation2 + $0x20] sm:$0xff]
        %v577 = vld [vmem:[#allocation2 + $0x28] sm:$0xff]
        %v578 = vld [vmem:[#allocation2 + $0x30] sm:$0xff]
        %v579 = vld [vmem:[#allocation2 + $0x38] sm:$0xff]
        %v580 = vld [vmem:[#allocation2 + $0x40] sm:$0xff]
        %v581 = vld [vmem:[#allocation2 + $0x48] sm:$0xff]
        %v582 = vld [vmem:[#allocation2 + $0x50] sm:$0xff]
        %v583 = vld [vmem:[#allocation2 + $0x58] sm:$0xff]
        %v584 = vld [vmem:[#allocation2 + $0x60] sm:$0xff]
        %v585 = vld [vmem:[#allocation2 + $0x68] sm:$0xff]
        %v586 = vld [vmem:[#allocation2 + $0x70] sm:$0xff]
        %v587 = vld [vmem:[#allocation2 + $0x78] sm:$0xff]
        %v588 = vld [vmem:[%s6] sm:$0x1]
        %v590 = vlaneseq
        %v591 = vshrl.u32 %v590, 7
        %v592 = vsub.s32 0, %v591
        %v593 = vrot.slane %v588, %v592
        %595 = vmatprep.subr.mxu0 0.0
        %596 = vmatpush1.msra.mxu0 %v572
        %597 = vmatprep.subr.mxu0 0.0
        %598 = vmatpush1.msra.mxu0 %v573
        %599 = vmatprep.subr.mxu0 0.0
        %600 = vmatpush1.msra.mxu0 %v574
        %601 = vmatprep.subr.mxu0 0.0
        %602 = vmatpush1.msra.mxu0 %v575
        %603 = vmatprep.subr.mxu0 0.0
        %604 = vmatpush1.msra.mxu0 %v576
        %605 = vmatprep.subr.mxu0 0.0
        %606 = vmatpush1.msra.mxu0 %v577
        %607 = vmatprep.subr.mxu0 0.0
        %608 = vmatpush1.msra.mxu0 %v578
        %609 = vmatprep.subr.mxu0 0.0
        %610 = vmatpush1.msra.mxu0 %v579
        %611 = vmatprep.subr.mxu0 0.0
        %612 = vmatpush1.msra.mxu0 %v580
        %613 = vmatprep.subr.mxu0 0.0
        %614 = vmatpush1.msra.mxu0 %v581
        %615 = vmatprep.subr.mxu0 0.0
        %616 = vmatpush1.msra.mxu0 %v582
        %617 = vmatprep.subr.mxu0 0.0
        %618 = vmatpush1.msra.mxu0 %v583
        %619 = vmatprep.subr.mxu0 0.0
        %620 = vmatpush1.msra.mxu0 %v584
        %621 = vmatprep.subr.mxu0 0.0
        %622 = vmatpush1.msra.mxu0 %v585
        %623 = vmatprep.subr.mxu0 0.0
        %624 = vmatpush1.msra.mxu0 %v586
        %625 = vmatprep.subr.mxu0 0.0
        %626 = vmatpush1.msra.mxu0 %v587
        %627 = vmatprep.subr.mxu0 0.0
        %628 = vmatpush1.msra.mxu0 0.0
        %629 = vmatprep.subr.mxu0 0.0
        %630 = vmatpush1.msra.mxu0 0.0
        %631 = vmatprep.subr.mxu0 0.0
        %632 = vmatpush1.msra.mxu0 0.0
        %633 = vmatprep.subr.mxu0 0.0
        %634 = vmatpush1.msra.mxu0 0.0
        %635 = vmatprep.subr.mxu0 0.0
        %636 = vmatpush1.msra.mxu0 0.0
        %637 = vmatprep.subr.mxu0 0.0
        %638 = vmatpush1.msra.mxu0 0.0
        %639 = vmatprep.subr.mxu0 0.0
        %640 = vmatpush1.msra.mxu0 0.0
        %641 = vmatprep.subr.mxu0 0.0
        %642 = vmatpush1.msra.mxu0 0.0
        %643 = vmatprep.subr.mxu0 0.0
        %644 = vmatpush1.msra.mxu0 0.0
        %645 = vmatprep.subr.mxu0 0.0
        %646 = vmatpush1.msra.mxu0 0.0
        %647 = vmatprep.subr.mxu0 0.0
        %648 = vmatpush1.msra.mxu0 0.0
        %649 = vmatprep.subr.mxu0 0.0
        %650 = vmatpush1.msra.mxu0 0.0
        %651 = vmatprep.subr.mxu0 0.0
        %652 = vmatpush1.msra.mxu0 0.0
        %653 = vmatprep.subr.mxu0 0.0
        %654 = vmatpush1.msra.mxu0 0.0
        %655 = vmatprep.subr.mxu0 0.0
        %656 = vmatpush1.msra.mxu0 0.0
        %657 = vmatprep.subr.mxu0 0.0
        %658 = vmatpush1.msra.mxu0 0.0
        %659 = vmatprep.mubr.f32.mxu0 0.0
        %660 = vmatmul.mubr.f32.gmra.mrb[0].mxu0 %v571
        %v661 = vpop.f32.mrb[0].mxu0
        %v662 = vadd.f32 %v593, %v661
        %v663 = vpop.f32.mrb[0].mxu0
        %664 = vdwg.mxu0
        %v665 = vld [vmem:[%s7] sm:$0x1]
        %v666 = vld [vmem:[%s8] sm:$0x1]
        %667 = vadd.xlane.f32.xlu0 %v662
        %v668 = vpop.xlane.xlu0 %667
        %v669 = vmul.f32 %v668, 0.01
        %v670 = vsub.f32 %v662, %v669
        %v671 = vmul.f32 %v670, %v457
        %v672 = vmul.f32 %v671, %v671
        %673 = vadd.xlane.f32.xlu0 %v672
        %v674 = vpop.xlane.xlu0 %673
        %v675 = vmul.f32 %v674, 0.01
        %v676 = vadd.f32 %v675, 1e-05
        %v677 = vrsqrt.pop %v676
        %v678 = vmul.f32 %v671, %v677
        %v680 = vlaneseq
        %v681 = vshrl.u32 %v680, 7
        %v682 = vsub.s32 0, %v681
        %v683 = vrot.slane %v665, %v682
        %v685 = vmul.f32 %v678, %v683
        %v687 = vlaneseq
        %v688 = vshrl.u32 %v687, 7
        %v689 = vsub.s32 0, %v688
        %v690 = vrot.slane %v666, %v689
        %v692 = vadd.f32 %v685, %v690
        %v693 = vmax.f32 %v692, 0.0
        %v694 = vld [vmem:[#allocation5] sm:$0xff]
        %v695 = vld [vmem:[#allocation5 + $0x8] sm:$0xff]
        %v696 = vld [vmem:[#allocation5 + $0x10] sm:$0xff]
        %v697 = vld [vmem:[#allocation5 + $0x18] sm:$0xff]
        %v698 = vld [vmem:[#allocation5 + $0x20] sm:$0xff]
        %v699 = vld [vmem:[#allocation5 + $0x28] sm:$0xff]
        %v700 = vld [vmem:[#allocation5 + $0x30] sm:$0xff]
        %v701 = vld [vmem:[#allocation5 + $0x38] sm:$0xff]
        %v702 = vld [vmem:[#allocation5 + $0x40] sm:$0xff]
        %v703 = vld [vmem:[#allocation5 + $0x48] sm:$0xff]
        %v704 = vld [vmem:[#allocation5 + $0x50] sm:$0xff]
        %v705 = vld [vmem:[#allocation5 + $0x58] sm:$0xff]
        %v706 = vld [vmem:[#allocation5 + $0x60] sm:$0xff]
        %v707 = vld [vmem:[#allocation5 + $0x68] sm:$0xff]
        %v708 = vld [vmem:[#allocation5 + $0x70] sm:$0xff]
        %v709 = vld [vmem:[#allocation5 + $0x78] sm:$0xff]
        %v710 = vld [vmem:[%s10] sm:$0x1]
        %v712 = vlaneseq
        %v713 = vshrl.u32 %v712, 7
        %v714 = vsub.s32 0, %v713
        %v715 = vrot.slane %v710, %v714
        %717 = vmatprep.subr.mxu0 0.0
        %718 = vmatpush1.msra.mxu0 %v694
        %719 = vmatprep.subr.mxu0 0.0
        %720 = vmatpush1.msra.mxu0 %v695
        %721 = vmatprep.subr.mxu0 0.0
        %722 = vmatpush1.msra.mxu0 %v696
        %723 = vmatprep.subr.mxu0 0.0
        %724 = vmatpush1.msra.mxu0 %v697
        %725 = vmatprep.subr.mxu0 0.0
        %726 = vmatpush1.msra.mxu0 %v698
        %727 = vmatprep.subr.mxu0 0.0
        %728 = vmatpush1.msra.mxu0 %v699
        %729 = vmatprep.subr.mxu0 0.0
        %730 = vmatpush1.msra.mxu0 %v700
        %731 = vmatprep.subr.mxu0 0.0
        %732 = vmatpush1.msra.mxu0 %v701
        %733 = vmatprep.subr.mxu0 0.0
        %734 = vmatpush1.msra.mxu0 %v702
        %735 = vmatprep.subr.mxu0 0.0
        %736 = vmatpush1.msra.mxu0 %v703
        %737 = vmatprep.subr.mxu0 0.0
        %738 = vmatpush1.msra.mxu0 %v704
        %739 = vmatprep.subr.mxu0 0.0
        %740 = vmatpush1.msra.mxu0 %v705
        %741 = vmatprep.subr.mxu0 0.0
        %742 = vmatpush1.msra.mxu0 %v706
        %743 = vmatprep.subr.mxu0 0.0
        %744 = vmatpush1.msra.mxu0 %v707
        %745 = vmatprep.subr.mxu0 0.0
        %746 = vmatpush1.msra.mxu0 %v708
        %747 = vmatprep.subr.mxu0 0.0
        %748 = vmatpush1.msra.mxu0 %v709
        %749 = vmatprep.subr.mxu0 0.0
        %750 = vmatpush1.msra.mxu0 0.0
        %751 = vmatprep.subr.mxu0 0.0
        %752 = vmatpush1.msra.mxu0 0.0
        %753 = vmatprep.subr.mxu0 0.0
        %754 = vmatpush1.msra.mxu0 0.0
        %755 = vmatprep.subr.mxu0 0.0
        %756 = vmatpush1.msra.mxu0 0.0
        %757 = vmatprep.subr.mxu0 0.0
        %758 = vmatpush1.msra.mxu0 0.0
        %759 = vmatprep.subr.mxu0 0.0
        %760 = vmatpush1.msra.mxu0 0.0
        %761 = vmatprep.subr.mxu0 0.0
        %762 = vmatpush1.msra.mxu0 0.0
        %763 = vmatprep.subr.mxu0 0.0
        %764 = vmatpush1.msra.mxu0 0.0
        %765 = vmatprep.subr.mxu0 0.0
        %766 = vmatpush1.msra.mxu0 0.0
        %767 = vmatprep.subr.mxu0 0.0
        %768 = vmatpush1.msra.mxu0 0.0
        %769 = vmatprep.subr.mxu0 0.0
        %770 = vmatpush1.msra.mxu0 0.0
        %771 = vmatprep.subr.mxu0 0.0
        %772 = vmatpush1.msra.mxu0 0.0
        %773 = vmatprep.subr.mxu0 0.0
        %774 = vmatpush1.msra.mxu0 0.0
        %775 = vmatprep.subr.mxu0 0.0
        %776 = vmatpush1.msra.mxu0 0.0
        %777 = vmatprep.subr.mxu0 0.0
        %778 = vmatpush1.msra.mxu0 0.0
        %779 = vmatprep.subr.mxu0 0.0
        %780 = vmatpush1.msra.mxu0 0.0
        %781 = vmatprep.mubr.f32.mxu0 0.0
        %782 = vmatmul.mubr.f32.gmra.mrb[0].mxu0 %v693
        %v783 = vpop.f32.mrb[0].mxu0
        %v784 = vadd.f32 %v715, %v783
        %v785 = vpop.f32.mrb[0].mxu0
        %786 = vdwg.mxu0
        %787 = vst [vmem:[%s440] sm:$0xff] %v784
        %s788 = sand.u32 %s292, 1
        %s789 = scalar_lea.sflag [#allocation4], %s788
        %s790 = sand.u32 %s292, 1
        %s791 = smul.addr %s790, 8
        %s792 = scalar_lea.vmem [#allocation7], %s791
        // Predicated region
        $region73: #{tpu_custom_call.1} parent=63 // pred_check
          %p793 = pneg %p302
        $region74: #{tpu_custom_call.1} parent=63 // pred_check_branch
          %795 = sbr.rel (%p793) target = $region76
        $region75: #{tpu_custom_call.1} parent=63 // pred_region
          %s797 = ssub.s32 128, 128
          %798 = vsyncadd %s789, %s797
          %s799 = sadd.s32 %s32, %s31
          %s800 = smul.addr %s799, 128
          %s801 = scalar_lea.hbm %s11, %s800
          %s803 = sshll.u32 %s792, 4
          %s804 = int_to_ptr.vmem [resolvable:$true] %s803
          %806 = dma.vmem_to_hbm [thread:$0]  %s804, 128, %s801, %s789
        $region76: #{tpu_custom_call.1} parent=63 // pred_fallthru
          _
      $region64: #{tpu_custom_call.1} parent=5 // pred_fallthru
        _
      %p807 = scmp.le.s32.totalorder 2, %s22
      // Predicated region
      $region77: #{tpu_custom_call.1} parent=5 // pred_check
        %p808 = pneg %p807
      $region78: #{tpu_custom_call.1} parent=5 // pred_check_branch
        %810 = sbr.rel (%p808) target = $region80
      $region79: #{tpu_custom_call.1} parent=5 // pred_region
        %s811 = ssub.s32 %s22, 2
        // Predicated region
        $region81: #{tpu_custom_call.1} parent=79 // pred_check
          %p812 = pneg %p308
        $region82: #{tpu_custom_call.1} parent=79 // pred_check_branch
          %814 = sbr.rel (%p812) target = $region84
        $region83: #{tpu_custom_call.1} parent=79 // pred_region
          %s815 = sand.u32 %s293, 1
          %s816 = scalar_lea.sflag [#allocation4], %s815
          %s817 = sand.u32 %s293, 1
          %s818 = smul.addr %s817, 8
          %s819 = scalar_lea.vmem [#allocation7], %s818
          %820 = dma.done %s816, 128
        $region84: #{tpu_custom_call.1} parent=79 // pred_fallthru
          _
      $region80: #{tpu_custom_call.1} parent=5 // pred_fallthru
        _
    $region6: #{tpu_custom_call.1} parent=1 // loop_footer
      %s26 = sadd.s32 1, %s22
    $region7: #{tpu_custom_call.1} parent=1 // loop_footer_branch
      %21 = sbr.rel target = $region3
    $region8: #{tpu_custom_call.1} parent=1 // loop_exit
      _
    %821 = vsyncpa [#allocation3], 1
    %s822 = scalar_lea.sflag [#allocation3], 1
    %823 = vsyncpa %s822, 1
    %824 = vsyncpa [#allocation6], 1
    %825 = vsyncpa [#allocation4], 1
    %s826 = scalar_lea.sflag [#allocation4], 1
    %827 = vsyncpa %s826, 1

</llo_original>
